<compile_context>
chip_gen: v7x
topology: tpu7x:2x2x1
jax: 0.10.0
libtpu: 0.0.40
codegen_flags: <defaults>
</compile_context>

<pallas_src>
import jax
import jax.numpy as jnp
from jax.experimental import pallas as pl
from jax.experimental.pallas import tpu as pltpu

WINDOW_SIZE = 10   # input / output features
H1 = 6             # hidden width
LATENT = 3         # latent width (folded away inside the kernel)
FPAD = 16          # padded feature/hidden dim used inside the kernel


def _autoencoder_kernel(w_ref, x_ref, out_ref):
    """One batch tile.  x_ref: (WINDOW_SIZE, TB), batch on the lane axis.

    w_ref is one packed (FPAD, 128) f32 slab (zero padded):
      [:, 0:10]    W1   (encoder Linear(10,6) weight, (out,in), rows 0:6 used)
      [:, 16:32]   W23  (folded Linear(6,3)∘Linear(3,6), rows/cols 0:6 used)
      [:, 32:48]   W4   (decoder Linear(6,10) weight, rows 0:10 used)
      [:, 48]      b1   [:, 49] b23   [:, 50] b4      (column biases)
    """
    x = x_ref[...]                                   # (10, TB)

    w1 = w_ref[:, 0:WINDOW_SIZE]                     # (16, 10)
    w23 = w_ref[:, 16:32]                            # (16, 16)
    w4 = w_ref[0:WINDOW_SIZE, 32:48]                 # (10, 16)
    b1 = w_ref[:, 48:49]                             # (16, 1)
    b23 = w_ref[:, 49:50]                            # (16, 1)
    b4 = w_ref[0:WINDOW_SIZE, 50:51]                 # (10, 1)

    # encoder Linear(10,6) + ReLU  (padded rows stay exactly 0)
    h = jnp.maximum(jnp.dot(w1, x, preferred_element_type=jnp.float32) + b1, 0.0)
    # folded Linear(6,3) -> Linear(3,6), then the decoder's ReLU
    d = jnp.maximum(jnp.dot(w23, h, preferred_element_type=jnp.float32) + b23, 0.0)
    # decoder Linear(6,10)
    y = jnp.dot(w4, d, preferred_element_type=jnp.float32) + b4   # (10, TB)

    out_ref[...] = y.astype(out_ref.dtype)


def _round_up(n, m):
    return (n + m - 1) // m * m


def pack_params(p):
    """Fold layers 2+3 and pack all weights/biases into one (16,128) slab."""
    w23 = p["w3"] @ p["w2"]                 # (6, 6)
    b23 = p["w3"] @ p["b2"] + p["b3"]       # (6,)
    slab = jnp.zeros((FPAD, 128), jnp.float32)
    slab = slab.at[0:H1, 0:WINDOW_SIZE].set(p["w1"])
    slab = slab.at[0:H1, 16:16 + H1].set(w23)
    slab = slab.at[0:WINDOW_SIZE, 32:32 + H1].set(p["w4"])
    slab = slab.at[0:H1, 48].set(p["b1"])
    slab = slab.at[0:H1, 49].set(b23)
    slab = slab.at[0:WINDOW_SIZE, 50].set(p["b4"])
    return slab


def autoencoder_forward(x, slab, *, tb=1024):
    """x: (B, WINDOW_SIZE) float32, slab: packed weights -> (B, WINDOW_SIZE)."""
    B = x.shape[0]
    # Lane-dense batch tile: multiple of 128, no bigger than needed.
    tb = _round_up(min(tb, _round_up(B, 128)), 128)
    b_pad = _round_up(B, tb)

    # Layout plumbing outside the kernel: batch onto the lane axis (+ pad).
    xt = jnp.pad(x.T, ((0, 0), (0, b_pad - B)))      # (10, b_pad)

    out_t = pl.pallas_call(
        _autoencoder_kernel,
        out_shape=jax.ShapeDtypeStruct((WINDOW_SIZE, b_pad), jnp.float32),
        grid=(b_pad // tb,),
        in_specs=[
            pl.BlockSpec((FPAD, 128), lambda i: (0, 0)),        # weights: resident
            pl.BlockSpec((WINDOW_SIZE, tb), lambda i: (0, i)),  # batch tile
        ],
        out_specs=pl.BlockSpec((WINDOW_SIZE, tb), lambda i: (0, i)),
        compiler_params=pltpu.CompilerParams(
            dimension_semantics=("parallel",)),
    )(slab, xt)

    return out_t[:, :B].T


def init_params(key):
    """PyTorch nn.Linear-style init, weights stored PyTorch-style (out, in)."""
    def linear(key, fan_in, fan_out):
        kw, kb = jax.random.split(key)
        bound = 1.0 / jnp.sqrt(float(fan_in))
        w = jax.random.uniform(kw, (fan_out, fan_in), jnp.float32, -bound, bound)
        b = jax.random.uniform(kb, (fan_out,), jnp.float32, -bound, bound)
        return w, b

    k1, k2, k3, k4 = jax.random.split(key, 4)
    w1, b1 = linear(k1, WINDOW_SIZE, H1)
    w2, b2 = linear(k2, H1, LATENT)
    w3, b3 = linear(k3, LATENT, H1)
    w4, b4 = linear(k4, H1, WINDOW_SIZE)
    return {"w1": w1, "b1": b1, "w2": w2, "b2": b2,
            "w3": w3, "b3": b3, "w4": w4, "b4": b4}


def reference_forward(x, p):
    """Unfused pure-JAX reference matching the PyTorch module exactly."""
    h = jnp.maximum(x @ p["w1"].T + p["b1"], 0.0)
    z = h @ p["w2"].T + p["b2"]
    d = jnp.maximum(z @ p["w3"].T + p["b3"], 0.0)
    return d @ p["w4"].T + p["b4"]


if __name__ == "__main__":
    key = jax.random.PRNGKey(0)
    k_params, k_x1, k_x2 = jax.random.split(key, 3)

    params = init_params(k_params)
    slab = pack_params(params)

    # Small batch (single tile).
    x_small = jax.random.normal(k_x1, (8, WINDOW_SIZE), jnp.float32)
    out_small = jax.block_until_ready(autoencoder_forward(x_small, slab))
    ref_small = reference_forward(x_small, params)
    assert out_small.shape == x_small.shape
    assert jnp.allclose(out_small, ref_small, atol=1e-5, rtol=1e-4)

    # Batch that is not a multiple of the tile: exercises the batch grid,
    # resident-weight BlockSpec and the pad/unpad path.
    x_big = jax.random.normal(k_x2, (300, WINDOW_SIZE), jnp.float32)
    out_big = jax.block_until_ready(autoencoder_forward(x_big, slab, tb=128))
    ref_big = reference_forward(x_big, params)
    assert out_big.shape == x_big.shape
    assert jnp.allclose(out_big, ref_big, atol=1e-5, rtol=1e-4)

    print("KERNEL_OK")
</pallas_src>

<mosaic_0001>
module attributes {stable_mosaic.version = 11 : i64} {
  func.func @_autoencoder_kernel(%arg0: i32, %arg1: memref<16x128xf32, #tpu.memory_space<vmem>>, %arg2: memref<10x128xf32, #tpu.memory_space<vmem>>, %arg3: memref<10x128xf32, #tpu.memory_space<vmem>>) attributes {dimension_semantics = [#tpu.dimension_semantics<parallel>], iteration_bounds = array<i64: 1>, scalar_prefetch = 0 : i64, scratch_operands = 0 : i64, tpu.core_type = #tpu.core_type<tc>, window_params = [{pipeline_mode = #tpu.pipeline_mode<synchronous>, transform_indices = @transform_0, window_bounds = array<i64: 16, 128>}, {transform_indices = @transform_1, window_bounds = array<i64: 10, 128>}, {transform_indices = @transform_2, window_bounds = array<i64: 10, 128>}]} {
    %c0 = arith.constant 0 : index
    %c0_0 = arith.constant 0 : index
    %0 = vector.load %arg2[%c0, %c0_0] : memref<10x128xf32, #tpu.memory_space<vmem>>, vector<10x128xf32>
    %c0_1 = arith.constant 0 : index
    %c0_2 = arith.constant 0 : index
    %1 = vector.load %arg1[%c0_1, %c0_2] : memref<16x128xf32, #tpu.memory_space<vmem>>, vector<16x10xf32>
    %c0_3 = arith.constant 0 : index
    %c16 = arith.constant 16 : index
    %2 = vector.load %arg1[%c0_3, %c16] : memref<16x128xf32, #tpu.memory_space<vmem>>, vector<16x16xf32>
    %c0_4 = arith.constant 0 : index
    %c32 = arith.constant 32 : index
    %3 = vector.load %arg1[%c0_4, %c32] : memref<16x128xf32, #tpu.memory_space<vmem>>, vector<10x16xf32>
    %c0_5 = arith.constant 0 : index
    %c48 = arith.constant 48 : index
    %4 = vector.load %arg1[%c0_5, %c48] : memref<16x128xf32, #tpu.memory_space<vmem>>, vector<16x1xf32>
    %c0_6 = arith.constant 0 : index
    %c49 = arith.constant 49 : index
    %5 = vector.load %arg1[%c0_6, %c49] : memref<16x128xf32, #tpu.memory_space<vmem>>, vector<16x1xf32>
    %c0_7 = arith.constant 0 : index
    %c50 = arith.constant 50 : index
    %6 = vector.load %arg1[%c0_7, %c50] : memref<16x128xf32, #tpu.memory_space<vmem>>, vector<10x1xf32>
    %cst = arith.constant dense<0.000000e+00> : vector<16x128xf32>
    %7 = tpu.matmul %1, %0, %cst {dimension_numbers = #tpu.dot_dimension_numbers<[1], [0], [0], [1], [0, 0, 1, 1], [], []>} : vector<16x10xf32>, vector<10x128xf32>, vector<16x128xf32> -> vector<16x128xf32>
    %8 = vector.broadcast %4 : vector<16x1xf32> to vector<16x128xf32>
    %9 = arith.addf %7, %8 : vector<16x128xf32>
    %cst_8 = arith.constant 0.000000e+00 : f32
    %10 = vector.broadcast %cst_8 : f32 to vector<16x128xf32>
    %11 = arith.maximumf %9, %10 : vector<16x128xf32>
    %cst_9 = arith.constant dense<0.000000e+00> : vector<16x128xf32>
    %12 = tpu.matmul %2, %11, %cst_9 {dimension_numbers = #tpu.dot_dimension_numbers<[1], [0], [0], [1], [0, 0, 1, 1], [], []>} : vector<16x16xf32>, vector<16x128xf32>, vector<16x128xf32> -> vector<16x128xf32>
    %13 = vector.broadcast %5 : vector<16x1xf32> to vector<16x128xf32>
    %14 = arith.addf %12, %13 : vector<16x128xf32>
    %cst_10 = arith.constant 0.000000e+00 : f32
    %15 = vector.broadcast %cst_10 : f32 to vector<16x128xf32>
    %16 = arith.maximumf %14, %15 : vector<16x128xf32>
    %cst_11 = arith.constant dense<0.000000e+00> : vector<10x128xf32>
    %17 = tpu.matmul %3, %16, %cst_11 {dimension_numbers = #tpu.dot_dimension_numbers<[1], [0], [0], [1], [0, 0, 1, 1], [], []>} : vector<10x16xf32>, vector<16x128xf32>, vector<10x128xf32> -> vector<10x128xf32>
    %18 = vector.broadcast %6 : vector<10x1xf32> to vector<10x128xf32>
    %19 = arith.addf %17, %18 : vector<10x128xf32>
    %c0_12 = arith.constant 0 : index
    %c0_13 = arith.constant 0 : index
    %20 = vector.load %arg3[%c0_12, %c0_13] : memref<10x128xf32, #tpu.memory_space<vmem>>, vector<10x128xf32>
    tpu.vector_store %arg3[%c0_12, %c0_13], %19 {strides = array<i32>} : memref<10x128xf32, #tpu.memory_space<vmem>>, vector<10x128xf32>,
    return
  }
  func.func @transform_0(%arg0: i32) -> (i32, i32) {
    %c0_i32 = arith.constant 0 : i32
    %c0_i32_0 = arith.constant 0 : i32
    %c0_i32_1 = arith.constant 0 : i32
    return %c0_i32, %c0_i32_0 : i32, i32
  }
  func.func @transform_1(%arg0: i32) -> (i32, i32) {
    %c0_i32 = arith.constant 0 : i32
    %c0_i32_0 = arith.constant 0 : i32
    return %c0_i32, %arg0 : i32, i32
  }
  func.func @transform_2(%arg0: i32) -> (i32, i32) {
    %c0_i32 = arith.constant 0 : i32
    %c0_i32_0 = arith.constant 0 : i32
    return %c0_i32, %arg0 : i32, i32
  }
}

</mosaic_0001>

<llo_original>
// kernel: tpu_custom_call.1
$region0: #{tpu_custom_call.1}
  #allocation0 [shape = 'u32[]', space=smem, size = 0x4, offset = 0x4, fixed_abs, tag = 'smem constant byte address 0x4 - core index']
  #allocation1 [shape = 'u32[144,128]{1,0:T(1,128)}', space=vmem, size = 0x12000, scoped, tag = 'internal scratch']
  %s0 = inlined_call_operand.hbm [shape: f32[16,128], index: 0, kind: input, shape index: {}]
  %s1 = inlined_call_operand.hbm [shape: f32[10,128], index: 1, kind: input, shape index: {}]
  %s2 = inlined_call_operand.hbm [shape: f32[10,128], index: 2, kind: output, shape index: {}]
  %s3 = sld [smem:[#allocation0]]
  $region26: #{tpu_custom_call.1} parent=0
    _
  %s5 = ssub.s32 1, %s3
  %s6 = scalar_select 0, %s5, %s3
  $region1: #{tpu_custom_call.1} parent=0
    #allocation2 [shape = 'u8[8192]{0}', space=vmem, size = 0x2000, scoped, tag = 'input window, operand 0, single buffered']
    #allocation3 [shape = 's32[1]{0}', space=sflag, size = 0x4, scoped, tag = 'scoped memory for tpu_custom_call.1']
    #allocation4 [shape = 's32[1]{0}', space=sflag, size = 0x4, scoped, tag = 'scoped memory for tpu_custom_call.1']
    #allocation5 [shape = 'u8[8192]{0}', space=vmem, size = 0x2000, scoped, tag = 'input window, operand 1, single buffered']
    #allocation6 [shape = 's32[1]{0}', space=sflag, size = 0x4, scoped, tag = 'scoped memory for tpu_custom_call.1']
    #allocation7 [shape = 'u8[8192]{0}', space=vmem, size = 0x2000, scoped, tag = 'output window, operand 0, single buffered']
    %7 = vsyncpa [#allocation3], 0
    %8 = vsyncpa [#allocation6], 0
    %9 = vsyncpa [#allocation4], 0
    // Predicated region
    $region2: #{tpu_custom_call.1} parent=1 // pred_check
      _
    $region3: #{tpu_custom_call.1} parent=1 // pred_check_branch
      %11 = sbr.rel (0) target = $region5
    $region4: #{tpu_custom_call.1} parent=1 // pred_region
      %s13 = ssub.s32 256, 256
      %14 = vsyncadd [#allocation3], %s13
      %s15 = sshll.u32 [#allocation2], 4
      %s16 = int_to_ptr.vmem [resolvable:$true] %s15
      %21 = dma.hbm_to_vmem [thread:$0]  %s0, 256, %s16, [#allocation3], 128, 128, 8
    $region5: #{tpu_custom_call.1} parent=1 // pred_fallthru
      _
    // Predicated region
    $region6: #{tpu_custom_call.1} parent=1 // pred_check
      _
    $region7: #{tpu_custom_call.1} parent=1 // pred_check_branch
      %23 = sbr.rel (0) target = $region9
    $region8: #{tpu_custom_call.1} parent=1 // pred_region
      %s25 = ssub.s32 256, 256
      %26 = vsyncadd [#allocation6], %s25
      %s27 = sshll.u32 [#allocation5], 4
      %s28 = int_to_ptr.vmem [resolvable:$true] %s27
      %33 = dma.hbm_to_vmem [thread:$0]  %s1, 256, %s28, [#allocation6], 128, 128, 8
    $region9: #{tpu_custom_call.1} parent=1 // pred_fallthru
      _
    // Predicated region
    $region10: #{tpu_custom_call.1} parent=1 // pred_check
      _
    $region11: #{tpu_custom_call.1} parent=1 // pred_check_branch
      %35 = sbr.rel (0) target = $region13
    $region12: #{tpu_custom_call.1} parent=1 // pred_region
      %36 = dma.done [#allocation3], 256
    $region13: #{tpu_custom_call.1} parent=1 // pred_fallthru
      _
    // Predicated region
    $region14: #{tpu_custom_call.1} parent=1 // pred_check
      _
    $region15: #{tpu_custom_call.1} parent=1 // pred_check_branch
      %38 = sbr.rel (0) target = $region17
    $region16: #{tpu_custom_call.1} parent=1 // pred_region
      %39 = dma.done [#allocation6], 256
    $region17: #{tpu_custom_call.1} parent=1 // pred_fallthru
      _
    %v40 = vld [vmem:[#allocation5] sm:$0xff]
    %v41 = vld [vmem:[#allocation5 + $0x8] sm:$0x3]
    %v42 = vld [vmem:[#allocation2] sm:$0xff]
    %v43 = vld [vmem:[#allocation2 + $0x8] sm:$0xff]
    %v44 = vld [vmem:[#allocation2] sm:$0xff]
    %v45 = vld [vmem:[#allocation2 + $0x8] sm:$0x3]
    %47 = vset.pattern.permute.xlu0 48
    %48 = vperm.xlu0 %47, %v42
    %v49 = vpop.permute.xlu0 %48
    %52 = vset.pattern.permute.xlu0 48
    %53 = vperm.xlu0 %52, %v43
    %v54 = vpop.permute.xlu0 %53
    %vm56 = vcmask 80896
    %v57 = vsel %vm56, %v42, 0
    %v59 = vsel %vm56, %v43, 0
    %vm61 = vcmask 1041408
    %v63 = vsel %vm61, %v41, 0
    %65 = vmatprep.subr.mxu0 0.0
    %66 = vmatpush1.msra.mxu0 %v40
    %67 = vmatprep.subr.mxu0 0.0
    %68 = vmatpush1.msra.mxu0 %v63
    %69 = vmatprep.subr.mxu0 0.0
    %70 = vmatpush1.msra.mxu0 0.0
    %71 = vmatprep.subr.mxu0 0.0
    %72 = vmatpush1.msra.mxu0 0.0
    %73 = vmatprep.subr.mxu0 0.0
    %74 = vmatpush1.msra.mxu0 0.0
    %75 = vmatprep.subr.mxu0 0.0
    %76 = vmatpush1.msra.mxu0 0.0
    %77 = vmatprep.subr.mxu0 0.0
    %78 = vmatpush1.msra.mxu0 0.0
    %79 = vmatprep.subr.mxu0 0.0
    %80 = vmatpush1.msra.mxu0 0.0
    %81 = vmatprep.subr.mxu0 0.0
    %82 = vmatpush1.msra.mxu0 0.0
    %83 = vmatprep.subr.mxu0 0.0
    %84 = vmatpush1.msra.mxu0 0.0
    %85 = vmatprep.subr.mxu0 0.0
    %86 = vmatpush1.msra.mxu0 0.0
    %87 = vmatprep.subr.mxu0 0.0
    %88 = vmatpush1.msra.mxu0 0.0
    %89 = vmatprep.subr.mxu0 0.0
    %90 = vmatpush1.msra.mxu0 0.0
    %91 = vmatprep.subr.mxu0 0.0
    %92 = vmatpush1.msra.mxu0 0.0
    %93 = vmatprep.subr.mxu0 0.0
    %94 = vmatpush1.msra.mxu0 0.0
    %95 = vmatprep.subr.mxu0 0.0
    %96 = vmatpush1.msra.mxu0 0.0
    %97 = vmatprep.subr.mxu0 0.0
    %98 = vmatpush1.msra.mxu0 0.0
    %99 = vmatprep.subr.mxu0 0.0
    %100 = vmatpush1.msra.mxu0 0.0
    %101 = vmatprep.subr.mxu0 0.0
    %102 = vmatpush1.msra.mxu0 0.0
    %103 = vmatprep.subr.mxu0 0.0
    %104 = vmatpush1.msra.mxu0 0.0
    %105 = vmatprep.subr.mxu0 0.0
    %106 = vmatpush1.msra.mxu0 0.0
    %107 = vmatprep.subr.mxu0 0.0
    %108 = vmatpush1.msra.mxu0 0.0
    %109 = vmatprep.subr.mxu0 0.0
    %110 = vmatpush1.msra.mxu0 0.0
    %111 = vmatprep.subr.mxu0 0.0
    %112 = vmatpush1.msra.mxu0 0.0
    %113 = vmatprep.subr.mxu0 0.0
    %114 = vmatpush1.msra.mxu0 0.0
    %115 = vmatprep.subr.mxu0 0.0
    %116 = vmatpush1.msra.mxu0 0.0
    %117 = vmatprep.subr.mxu0 0.0
    %118 = vmatpush1.msra.mxu0 0.0
    %119 = vmatprep.subr.mxu0 0.0
    %120 = vmatpush1.msra.mxu0 0.0
    %121 = vmatprep.subr.mxu0 0.0
    %122 = vmatpush1.msra.mxu0 0.0
    %123 = vmatprep.subr.mxu0 0.0
    %124 = vmatpush1.msra.mxu0 0.0
    %125 = vmatprep.subr.mxu0 0.0
    %126 = vmatpush1.msra.mxu0 0.0
    %127 = vmatprep.subr.mxu0 0.0
    %128 = vmatpush1.msra.mxu0 0.0
    %129 = vmatprep.mubr.f32.mxu0 0.0
    %130 = vmatmul.mubr.f32.gmra.mrb[0].mxu0 %v57
    %v131 = vpop.f32.mrb[0].mxu0
    %v132 = vadd.f32 %v49, %v131
    %v133 = vpop.f32.mrb[0].mxu0
    %134 = vmatprep.mubr.f32.mxu0 0.0
    %135 = vmatmul.mubr.f32.gmra.mrb[0].mxu0 %v59
    %v136 = vpop.f32.mrb[0].mxu0
    %v137 = vadd.f32 %v54, %v136
    %v138 = vpop.f32.mrb[0].mxu0
    %139 = vdwg.mxu0
    %v140 = vmax.f32 %v132, 0.0
    %v141 = vmax.f32 %v137, 0.0
    %142 = vset.pattern.permute.xlu0 49
    %143 = vperm.xlu0 %142, %v42
    %v144 = vpop.permute.xlu0 %143
    %146 = vset.pattern.permute.xlu0 49
    %147 = vperm.xlu0 %146, %v43
    %v148 = vpop.permute.xlu0 %147
    %150 = vrot.lane.b32.xlu0 %v42, 112
    %v151 = vpop.permute.xlu0 %150
    %152 = vrot.lane.b32.xlu0 %v43, 112
    %v153 = vpop.permute.xlu0 %152
    %vm154 = vcmask 130048
    %v155 = vsel %vm154, %v151, 0
    %v157 = vsel %vm154, %v153, 0
    %159 = vmatprep.subr.mxu0 0.0
    %160 = vmatpush1.msra.mxu0 %v140
    %161 = vmatprep.subr.mxu0 0.0
    %162 = vmatpush1.msra.mxu0 %v141
    %163 = vmatprep.subr.mxu0 0.0
    %164 = vmatpush1.msra.mxu0 0.0
    %165 = vmatprep.subr.mxu0 0.0
    %166 = vmatpush1.msra.mxu0 0.0
    %167 = vmatprep.subr.mxu0 0.0
    %168 = vmatpush1.msra.mxu0 0.0
    %169 = vmatprep.subr.mxu0 0.0
    %170 = vmatpush1.msra.mxu0 0.0
    %171 = vmatprep.subr.mxu0 0.0
    %172 = vmatpush1.msra.mxu0 0.0
    %173 = vmatprep.subr.mxu0 0.0
    %174 = vmatpush1.msra.mxu0 0.0
    %175 = vmatprep.subr.mxu0 0.0
    %176 = vmatpush1.msra.mxu0 0.0
    %177 = vmatprep.subr.mxu0 0.0
    %178 = vmatpush1.msra.mxu0 0.0
    %179 = vmatprep.subr.mxu0 0.0
    %180 = vmatpush1.msra.mxu0 0.0
    %181 = vmatprep.subr.mxu0 0.0
    %182 = vmatpush1.msra.mxu0 0.0
    %183 = vmatprep.subr.mxu0 0.0
    %184 = vmatpush1.msra.mxu0 0.0
    %185 = vmatprep.subr.mxu0 0.0
    %186 = vmatpush1.msra.mxu0 0.0
    %187 = vmatprep.subr.mxu0 0.0
    %188 = vmatpush1.msra.mxu0 0.0
    %189 = vmatprep.subr.mxu0 0.0
    %190 = vmatpush1.msra.mxu0 0.0
    %191 = vmatprep.subr.mxu0 0.0
    %192 = vmatpush1.msra.mxu0 0.0
    %193 = vmatprep.subr.mxu0 0.0
    %194 = vmatpush1.msra.mxu0 0.0
    %195 = vmatprep.subr.mxu0 0.0
    %196 = vmatpush1.msra.mxu0 0.0
    %197 = vmatprep.subr.mxu0 0.0
    %198 = vmatpush1.msra.mxu0 0.0
    %199 = vmatprep.subr.mxu0 0.0
    %200 = vmatpush1.msra.mxu0 0.0
    %201 = vmatprep.subr.mxu0 0.0
    %202 = vmatpush1.msra.mxu0 0.0
    %203 = vmatprep.subr.mxu0 0.0
    %204 = vmatpush1.msra.mxu0 0.0
    %205 = vmatprep.subr.mxu0 0.0
    %206 = vmatpush1.msra.mxu0 0.0
    %207 = vmatprep.subr.mxu0 0.0
    %208 = vmatpush1.msra.mxu0 0.0
    %209 = vmatprep.subr.mxu0 0.0
    %210 = vmatpush1.msra.mxu0 0.0
    %211 = vmatprep.subr.mxu0 0.0
    %212 = vmatpush1.msra.mxu0 0.0
    %213 = vmatprep.subr.mxu0 0.0
    %214 = vmatpush1.msra.mxu0 0.0
    %215 = vmatprep.subr.mxu0 0.0
    %216 = vmatpush1.msra.mxu0 0.0
    %217 = vmatprep.subr.mxu0 0.0
    %218 = vmatpush1.msra.mxu0 0.0
    %219 = vmatprep.subr.mxu0 0.0
    %220 = vmatpush1.msra.mxu0 0.0
    %221 = vmatprep.subr.mxu0 0.0
    %222 = vmatpush1.msra.mxu0 0.0
    %223 = vmatprep.mubr.f32.mxu0 0.0
    %224 = vmatmul.mubr.f32.gmra.mrb[0].mxu0 %v155
    %v225 = vpop.f32.mrb[0].mxu0
    %v226 = vadd.f32 %v144, %v225
    %v227 = vpop.f32.mrb[0].mxu0
    %228 = vmatprep.mubr.f32.mxu0 0.0
    %229 = vmatmul.mubr.f32.gmra.mrb[0].mxu0 %v157
    %v230 = vpop.f32.mrb[0].mxu0
    %v231 = vadd.f32 %v148, %v230
    %v232 = vpop.f32.mrb[0].mxu0
    %233 = vdwg.mxu0
    %v234 = vmax.f32 %v226, 0.0
    %v235 = vmax.f32 %v231, 0.0
    %237 = vset.pattern.permute.xlu0 50
    %238 = vperm.xlu0 %237, %v44
    %v239 = vpop.permute.xlu0 %238
    %242 = vset.pattern.permute.xlu0 50
    %243 = vperm.xlu0 %242, %v45
    %v244 = vpop.permute.xlu0 %243
    %246 = vrot.lane.b32.xlu0 %v44, 96
    %v247 = vpop.permute.xlu0 %246
    %248 = vrot.lane.b32.xlu0 %v45, 96
    %v249 = vpop.permute.xlu0 %248
    %v250 = vsel %vm154, %v247, 0
    %v252 = vsel %vm154, %v249, 0
    %254 = vmatprep.subr.mxu0 0.0
    %255 = vmatpush1.msra.mxu0 %v234
    %256 = vmatprep.subr.mxu0 0.0
    %257 = vmatpush1.msra.mxu0 %v235
    %258 = vmatprep.subr.mxu0 0.0
    %259 = vmatpush1.msra.mxu0 0.0
    %260 = vmatprep.subr.mxu0 0.0
    %261 = vmatpush1.msra.mxu0 0.0
    %262 = vmatprep.subr.mxu0 0.0
    %263 = vmatpush1.msra.mxu0 0.0
    %264 = vmatprep.subr.mxu0 0.0
    %265 = vmatpush1.msra.mxu0 0.0
    %266 = vmatprep.subr.mxu0 0.0
    %267 = vmatpush1.msra.mxu0 0.0
    %268 = vmatprep.subr.mxu0 0.0
    %269 = vmatpush1.msra.mxu0 0.0
    %270 = vmatprep.subr.mxu0 0.0
    %271 = vmatpush1.msra.mxu0 0.0
    %272 = vmatprep.subr.mxu0 0.0
    %273 = vmatpush1.msra.mxu0 0.0
    %274 = vmatprep.subr.mxu0 0.0
    %275 = vmatpush1.msra.mxu0 0.0
    %276 = vmatprep.subr.mxu0 0.0
    %277 = vmatpush1.msra.mxu0 0.0
    %278 = vmatprep.subr.mxu0 0.0
    %279 = vmatpush1.msra.mxu0 0.0
    %280 = vmatprep.subr.mxu0 0.0
    %281 = vmatpush1.msra.mxu0 0.0
    %282 = vmatprep.subr.mxu0 0.0
    %283 = vmatpush1.msra.mxu0 0.0
    %284 = vmatprep.subr.mxu0 0.0
    %285 = vmatpush1.msra.mxu0 0.0
    %286 = vmatprep.subr.mxu0 0.0
    %287 = vmatpush1.msra.mxu0 0.0
    %288 = vmatprep.subr.mxu0 0.0
    %289 = vmatpush1.msra.mxu0 0.0
    %290 = vmatprep.subr.mxu0 0.0
    %291 = vmatpush1.msra.mxu0 0.0
    %292 = vmatprep.subr.mxu0 0.0
    %293 = vmatpush1.msra.mxu0 0.0
    %294 = vmatprep.subr.mxu0 0.0
    %295 = vmatpush1.msra.mxu0 0.0
    %296 = vmatprep.subr.mxu0 0.0
    %297 = vmatpush1.msra.mxu0 0.0
    %298 = vmatprep.subr.mxu0 0.0
    %299 = vmatpush1.msra.mxu0 0.0
    %300 = vmatprep.subr.mxu0 0.0
    %301 = vmatpush1.msra.mxu0 0.0
    %302 = vmatprep.subr.mxu0 0.0
    %303 = vmatpush1.msra.mxu0 0.0
    %304 = vmatprep.subr.mxu0 0.0
    %305 = vmatpush1.msra.mxu0 0.0
    %306 = vmatprep.subr.mxu0 0.0
    %307 = vmatpush1.msra.mxu0 0.0
    %308 = vmatprep.subr.mxu0 0.0
    %309 = vmatpush1.msra.mxu0 0.0
    %310 = vmatprep.subr.mxu0 0.0
    %311 = vmatpush1.msra.mxu0 0.0
    %312 = vmatprep.subr.mxu0 0.0
    %313 = vmatpush1.msra.mxu0 0.0
    %314 = vmatprep.subr.mxu0 0.0
    %315 = vmatpush1.msra.mxu0 0.0
    %316 = vmatprep.subr.mxu0 0.0
    %317 = vmatpush1.msra.mxu0 0.0
    %318 = vmatprep.mubr.f32.mxu0 0.0
    %319 = vmatmul.mubr.f32.gmra.mrb[0].mxu0 %v250
    %v320 = vpop.f32.mrb[0].mxu0
    %v321 = vadd.f32 %v239, %v320
    %v322 = vpop.f32.mrb[0].mxu0
    %323 = vmatprep.mubr.f32.mxu0 0.0
    %324 = vmatmul.mubr.f32.gmra.mrb[0].mxu0 %v252
    %v325 = vpop.f32.mrb[0].mxu0
    %v326 = vadd.f32 %v244, %v325
    %v327 = vpop.f32.mrb[0].mxu0
    %328 = vdwg.mxu0
    %329 = vst [vmem:[#allocation7] sm:$0xff] %v321
    %330 = vst [vmem:[#allocation7 + $0x8] sm:$0x3] %v326
    // Predicated region
    $region18: #{tpu_custom_call.1} parent=1 // pred_check
      _
    $region19: #{tpu_custom_call.1} parent=1 // pred_check_branch
      %332 = sbr.rel (0) target = $region21
    $region20: #{tpu_custom_call.1} parent=1 // pred_region
      %s334 = ssub.s32 256, 256
      %335 = vsyncadd [#allocation4], %s334
      %s336 = sshll.u32 [#allocation7], 4
      %s337 = int_to_ptr.vmem [resolvable:$true] %s336
      %342 = dma.vmem_to_hbm [thread:$0]  %s337, 256, %s2, [#allocation4], 128, 128, 8
    $region21: #{tpu_custom_call.1} parent=1 // pred_fallthru
      _
    // Predicated region
    $region22: #{tpu_custom_call.1} parent=1 // pred_check
      _
    $region23: #{tpu_custom_call.1} parent=1 // pred_check_branch
      %344 = sbr.rel (0) target = $region25
    $region24: #{tpu_custom_call.1} parent=1 // pred_region
      %345 = dma.done [#allocation4], 256
    $region25: #{tpu_custom_call.1} parent=1 // pred_fallthru
      _
    %346 = vsyncpa [#allocation3], 1
    %347 = vsyncpa [#allocation6], 1
    %348 = vsyncpa [#allocation4], 1

</llo_original>
